<compile_context>
chip_gen: v5e
topology: v5e:2x2
jax: 0.10.0
libtpu: 0.0.40
codegen_flags: <defaults>
</compile_context>

<pallas_src>
from functools import partial

import jax
import jax.numpy as jnp
from jax import lax
from jax.experimental import pallas as pl
from jax.experimental.pallas import tpu as pltpu


def _round_up(x, m):
    return ((x + m - 1) // m) * m


def _pick_tile(dim, target, quantum):
    """Largest divisor of `dim` that is a multiple of `quantum` and <= target.

    `dim` must already be a multiple of `quantum`.
    """
    if dim <= target:
        return dim
    for cand in range(target - target % quantum, quantum - 1, -quantum):
        if dim % cand == 0:
            return cand
    return quantum


# ---------------------------------------------------------------------------
# Kernels
# ---------------------------------------------------------------------------
def _pw_kernel_nosplit(x_ref, w_ref, off_ref, o_ref, *, compute_dtype):
    """Single-K-step kernel: o = x @ W - offset  (fused epilogue, no scratch).

    x_ref:   (tm, K)   activation tile in its original dtype (cast here, on the
                       VPU, so it hides under the MXU instead of costing an
                       extra wrapper-side HBM pass)
    w_ref:   (K, tn)   weight tile, (K, N) "NN" layout, already compute_dtype
    off_ref: (1, tn)   f32 bias @ W.T tile (broadcast over rows)
    o_ref:   (tm, tn)  output tile
    """
    x = x_ref[...].astype(compute_dtype)
    acc = jnp.dot(x, w_ref[...], preferred_element_type=jnp.float32)
    o_ref[...] = (acc - off_ref[...]).astype(o_ref.dtype)


def _pw_kernel_ksplit(x_ref, w_ref, off_ref, o_ref, acc_ref, *, compute_dtype):
    """K-split kernel: grid axis 2 walks K; acc_ref is a resident f32 accumulator."""
    @pl.when(pl.program_id(2) == 0)
    def _init():
        acc_ref[...] = jnp.zeros_like(acc_ref)

    acc_ref[...] += jnp.dot(x_ref[...].astype(compute_dtype), w_ref[...],
                            preferred_element_type=jnp.float32)

    @pl.when(pl.program_id(2) == pl.num_programs(2) - 1)
    def _finalize():
        o_ref[...] = (acc_ref[...] - off_ref[...]).astype(o_ref.dtype)


# ---------------------------------------------------------------------------
# Wrapper
# ---------------------------------------------------------------------------
def pw_layer(x, bias, weight, *, compute_dtype=jnp.bfloat16, tm=None,
             resident_vmem_budget=12 * 1024 * 1024):
    """y = (dropout(x) - bias) @ weight.T, with dropout(p=0.0) == identity.

    x:      (M, K)  activations
    bias:   (K,)    whitening bias
    weight: (N, K)  nn.Linear weight (PyTorch layout; transposed once here)
    compute_dtype:  MXU input dtype (default bf16; accumulation stays float32
                    and the output keeps x.dtype). Pass jnp.float32 or None for
                    full-precision compute.
    resident_vmem_budget: VMEM byte budget used to decide whether the whole
                    weight can stay resident (conservative vs. v5e's 16 MiB
                    scoped default).
    """
    M, K = x.shape
    N, Kw = weight.shape
    assert K == Kw and bias.shape == (K,)
    out_dtype = x.dtype
    if compute_dtype is None:
        compute_dtype = x.dtype

    # One-time weight prep (amortized over all M tiles / calls): transpose to
    # (K, N) so the kernel is a plain NN matmul, and pre-cast to compute dtype.
    w_kn = weight.T.astype(compute_dtype)

    # Fold the whitening bias into an output offset, computed with the SAME
    # casted weight the kernel uses:  (x - b) @ W.T = x @ W.T - (b @ W.T).
    offset = jnp.dot(bias.astype(compute_dtype)[None, :], w_kn,
                     preferred_element_type=jnp.float32)  # (1, N) float32

    x_item = jnp.dtype(x.dtype).itemsize
    o_item = jnp.dtype(out_dtype).itemsize
    c_item = jnp.dtype(compute_dtype).itemsize

    # ---- M tiling: balanced blocks; >= 2 blocks so both v7x TCs get work ----
    if tm is None:
        if M <= 8:
            tm = M                      # block == full dim is always legal
        else:
            n_m_blocks = max(pl.cdiv(M, 512), 2)
            tm = min(_round_up(pl.cdiv(M, n_m_blocks), 8), _round_up(M, 8))
    n_mi = pl.cdiv(M, tm)

    # ---- Resident-weight fast path ------------------------------------------
    # Weight + offset block indices never change -> DMA'd once per call; only
    # x / out tiles stream from/to HBM. Footprint estimate: single-buffered
    # weight/offset + double-buffered x and out tiles.
    resident_bytes = (K * N * c_item
                      + 2 * N * 4
                      + 2 * tm * K * x_item
                      + 2 * tm * N * o_item)
    resident = resident_bytes <= resident_vmem_budget

    if resident:
        tk, tn = K, N
        n_nj, n_nk = 1, 1
    else:
        # N tiling: full N when small, else lane-dense 512-wide blocks (the
        # last block is clipped on writeback when 512 does not divide N).
        tn = N if N <= 512 else 512
        n_nj = pl.cdiv(N, tn)
        # K tiling: single block when it fits; otherwise zero-pad K to a
        # multiple of 128 and split exactly (partial K blocks would feed
        # garbage into the reduction, so padding is required here).
        if K <= 1024:
            tk, n_nk = K, 1
        else:
            Kp = _round_up(K, 128)
            if Kp != K:
                x = jnp.pad(x, ((0, 0), (0, Kp - K)))
                w_kn = jnp.pad(w_kn, ((0, Kp - K), (0, 0)))
            tk = _pick_tile(Kp, 512, 128)
            n_nk = Kp // tk

    out_shape = jax.ShapeDtypeStruct((M, N), out_dtype)

    if n_nk == 1:
        # No K split: no accumulator scratch, fused write of (dot - offset).
        kernel = partial(_pw_kernel_nosplit, compute_dtype=compute_dtype)
        grid_spec = pltpu.PrefetchScalarGridSpec(
            num_scalar_prefetch=0,
            grid=(n_mi, n_nj),
            in_specs=[
                pl.BlockSpec((tm, tk), lambda i, j: (i, 0)),   # x row tile
                pl.BlockSpec((tk, tn), lambda i, j: (0, j)),   # W in (K, N)
                pl.BlockSpec((1, tn), lambda i, j: (0, j)),    # bias @ W.T
            ],
            out_specs=pl.BlockSpec((tm, tn), lambda i, j: (i, j)),
        )
        dims = ("parallel", "parallel")
    else:
        # Large weight: stream (tk, tn) weight tiles and accumulate over K.
        kernel = partial(_pw_kernel_ksplit, compute_dtype=compute_dtype)
        grid_spec = pltpu.PrefetchScalarGridSpec(
            num_scalar_prefetch=0,
            grid=(n_mi, n_nj, n_nk),
            in_specs=[
                pl.BlockSpec((tm, tk), lambda i, j, k: (i, k)),
                pl.BlockSpec((tk, tn), lambda i, j, k: (k, j)),
                pl.BlockSpec((1, tn), lambda i, j, k: (0, j)),
            ],
            out_specs=pl.BlockSpec((tm, tn), lambda i, j, k: (i, j)),
            scratch_shapes=[pltpu.VMEM((tm, tn), jnp.float32)],
        )
        dims = ("parallel", "parallel", "arbitrary")

    return pl.pallas_call(
        kernel,
        out_shape=out_shape,
        grid_spec=grid_spec,
        compiler_params=pltpu.CompilerParams(dimension_semantics=dims),
    )(x, w_kn, offset)


# ---------------------------------------------------------------------------
# Self-test
# ---------------------------------------------------------------------------
if __name__ == "__main__":
    def reference(x, bias, weight):
        return lax.dot_general(
            (x - bias[None, :]).astype(jnp.float32), weight.astype(jnp.float32),
            dimension_numbers=(((1,), (1,)), ((), ())),
            precision=lax.Precision.HIGHEST,
            preferred_element_type=jnp.float32,
        )

    key = jax.random.PRNGKey(0)
    ks = jax.random.split(key, 9)

    # --- Case 1: small module-consistent shapes (batch=2, seq=8 -> M=16 rows,
    #     input_size=32, output_size=64). Resident-weight path, 2 M blocks. ---
    M, K, N = 16, 32, 64
    x = jax.random.normal(ks[0], (M, K), dtype=jnp.float32)
    w = 0.02 * jax.random.normal(ks[1], (N, K), dtype=jnp.float32)  # _init_weights
    b = 0.1 * jax.random.normal(ks[2], (K,), dtype=jnp.float32)     # nonzero bias
    ref1 = reference(x, b, w)

    y1 = jax.block_until_ready(pw_layer(x, b, w))                    # bf16 default
    assert y1.shape == (M, N)
    assert jnp.allclose(y1, ref1, atol=3e-2, rtol=3e-2)

    y1_f32 = jax.block_until_ready(pw_layer(x, b, w, compute_dtype=jnp.float32))
    assert jnp.allclose(y1_f32, ref1, atol=1e-2, rtol=1e-2)

    # --- Case 2: force the K-split accumulating path (resident budget 0),
    #     ragged balanced M tiles (72 -> 40 + 32), K = 1536 -> 3 K-steps. ------
    M2, K2, N2 = 72, 1536, 256
    x2 = jax.random.normal(ks[3], (M2, K2), dtype=jnp.float32)
    w2 = 0.02 * jax.random.normal(ks[4], (N2, K2), dtype=jnp.float32)
    b2 = 0.1 * jax.random.normal(ks[5], (K2,), dtype=jnp.float32)
    ref2 = reference(x2, b2, w2)

    y2 = jax.block_until_ready(pw_layer(x2, b2, w2, resident_vmem_budget=0))
    assert y2.shape == (M2, N2)
    assert jnp.allclose(y2, ref2, atol=3e-2, rtol=3e-2)

    y2_f32 = jax.block_until_ready(
        pw_layer(x2, b2, w2, compute_dtype=jnp.float32, resident_vmem_budget=0))
    assert jnp.allclose(y2_f32, ref2, atol=2e-2, rtol=2e-2)

    # --- Case 3: non-128-multiple N with clipped last-block writeback
    #     (unpadded output, no post-slice pass), forced non-resident. ---------
    M3, K3, N3 = 48, 640, 600
    x3 = jax.random.normal(ks[6], (M3, K3), dtype=jnp.float32)
    w3 = 0.02 * jax.random.normal(ks[7], (N3, K3), dtype=jnp.float32)
    b3 = 0.1 * jax.random.normal(ks[8], (K3,), dtype=jnp.float32)
    ref3 = reference(x3, b3, w3)

    y3 = jax.block_until_ready(pw_layer(x3, b3, w3, resident_vmem_budget=0))
    assert y3.shape == (M3, N3)
    assert jnp.allclose(y3, ref3, atol=3e-2, rtol=3e-2)

    # TODO(synk): nn.Dropout with p>0 in training mode would need in-kernel
    # pltpu.prng_seed / pltpu.prng_random_bits masking; the module default
    # p=0.0 is the identity, which is what these kernels implement.

    print("KERNEL_OK")
</pallas_src>

<mosaic_0001>
module attributes {stable_mosaic.version = 11 : i64} {
  func.func @_pw_kernel_nosplit(%arg0: i32, %arg1: i32, %arg2: memref<8x32xf32, #tpu.memory_space<vmem>>, %arg3: memref<32x64xbf16, #tpu.memory_space<vmem>>, %arg4: memref<1x64xf32, #tpu.memory_space<vmem>>, %arg5: memref<8x64xf32, #tpu.memory_space<vmem>>) attributes {dimension_semantics = [#tpu.dimension_semantics<parallel>, #tpu.dimension_semantics<parallel>], iteration_bounds = array<i64: 2, 1>, scalar_prefetch = 0 : i64, scratch_operands = 0 : i64, tpu.core_type = #tpu.core_type<tc>, window_params = [{transform_indices = @transform_0, window_bounds = array<i64: 8, 32>}, {transform_indices = @transform_1, window_bounds = array<i64: 32, 64>}, {transform_indices = @transform_2, window_bounds = array<i64: 1, 64>}, {transform_indices = @transform_3, window_bounds = array<i64: 8, 64>}]} {
    %c0 = arith.constant 0 : index
    %c0_0 = arith.constant 0 : index
    %0 = vector.load %arg2[%c0, %c0_0] : memref<8x32xf32, #tpu.memory_space<vmem>>, vector<8x32xf32>
    %1 = arith.truncf %0 : vector<8x32xf32> to vector<8x32xbf16>
    %c0_1 = arith.constant 0 : index
    %c0_2 = arith.constant 0 : index
    %2 = vector.load %arg3[%c0_1, %c0_2] : memref<32x64xbf16, #tpu.memory_space<vmem>>, vector<32x64xbf16>
    %cst = arith.constant dense<0.000000e+00> : vector<8x64xf32>
    %3 = tpu.matmul %1, %2, %cst {dimension_numbers = #tpu.dot_dimension_numbers<[1], [0], [0], [1], [0, 0, 1, 1], [], []>} : vector<8x32xbf16>, vector<32x64xbf16>, vector<8x64xf32> -> vector<8x64xf32>
    %c0_3 = arith.constant 0 : index
    %c0_4 = arith.constant 0 : index
    %4 = vector.load %arg4[%c0_3, %c0_4] : memref<1x64xf32, #tpu.memory_space<vmem>>, vector<1x64xf32>
    %5 = vector.broadcast %4 : vector<1x64xf32> to vector<8x64xf32>
    %6 = arith.subf %3, %5 : vector<8x64xf32>
    %c0_5 = arith.constant 0 : index
    %c0_6 = arith.constant 0 : index
    %7 = vector.load %arg5[%c0_5, %c0_6] : memref<8x64xf32, #tpu.memory_space<vmem>>, vector<8x64xf32>
    tpu.vector_store %arg5[%c0_5, %c0_6], %6 {strides = array<i32>} : memref<8x64xf32, #tpu.memory_space<vmem>>, vector<8x64xf32>,
    return
  }
  func.func @transform_0(%arg0: i32, %arg1: i32) -> (i32, i32) {
    %c0_i32 = arith.constant 0 : i32
    %c0_i32_0 = arith.constant 0 : i32
    return %arg0, %c0_i32 : i32, i32
  }
  func.func @transform_1(%arg0: i32, %arg1: i32) -> (i32, i32) {
    %c0_i32 = arith.constant 0 : i32
    %c0_i32_0 = arith.constant 0 : i32
    return %c0_i32, %arg1 : i32, i32
  }
  func.func @transform_2(%arg0: i32, %arg1: i32) -> (i32, i32) {
    %c0_i32 = arith.constant 0 : i32
    %c0_i32_0 = arith.constant 0 : i32
    return %c0_i32, %arg1 : i32, i32
  }
  func.func @transform_3(%arg0: i32, %arg1: i32) -> (i32, i32) {
    %c0_i32 = arith.constant 0 : i32
    return %arg0, %arg1 : i32, i32
  }
}

</mosaic_0001>

<llo_original>
// kernel: tpu_custom_call.1
$region0: #{tpu_custom_call.1}
  #allocation0 [shape = 'u32[]', space=smem, size = 0x4, offset = 0x4, fixed_abs, tag = 'smem constant byte address 0x4 - core index']
  #allocation1 [shape = 'u32[72,128]{1,0:T(1,128)}', space=vmem, size = 0x9000, scoped, tag = 'internal scratch']
  %s0 = inlined_call_operand.hbm [shape: f32[16,32], index: 0, kind: input, shape index: {}]
  %s1 = inlined_call_operand.hbm [shape: bf16[32,64], index: 1, kind: input, shape index: {}]
  %s2 = inlined_call_operand.vmem [shape: f32[1,64], index: 2, kind: input, shape index: {}]
  %s3 = inlined_call_operand.hbm [shape: f32[16,64], index: 3, kind: output, shape index: {}]
  %s4 = sld [smem:[#allocation0]]
  $region53: #{tpu_custom_call.1} parent=0
    _
  %s6 = ssub.s32 1, %s4
  %s7 = scalar_select 0, %s6, %s4
  $region1: #{tpu_custom_call.1} parent=0
    #allocation2 [shape = 'u8[8192]{0}', space=vmem, size = 0x2000, scoped, tag = 'input window, operand 0']
    #allocation3 [shape = 's32[2]{0}', space=sflag, size = 0x8, scoped, tag = 'scoped memory for tpu_custom_call.1']
    #allocation4 [shape = 's32[2]{0}', space=sflag, size = 0x8, scoped, tag = 'scoped memory for tpu_custom_call.1']
    #allocation5 [shape = 'u8[8192]{0}', space=vmem, size = 0x2000, scoped, tag = 'input window, operand 1, single buffered']
    #allocation6 [shape = 's32[1]{0}', space=sflag, size = 0x4, scoped, tag = 'scoped memory for tpu_custom_call.1']
    #allocation7 [shape = 'u8[8192]{0}', space=vmem, size = 0x2000, scoped, tag = 'output window, operand 0']
    %8 = vsyncpa [#allocation3], 0
    %s9 = scalar_lea.sflag [#allocation3], 1
    %10 = vsyncpa %s9, 0
    %11 = vsyncpa [#allocation6], 0
    %12 = vsyncpa [#allocation4], 0
    %s13 = scalar_lea.sflag [#allocation4], 1
    %14 = vsyncpa %s13, 0
    loop: start=0, step=1, limit=4
    $region2: #{tpu_custom_call.1} parent=1 // loop_pre_header
      _
    $region3: #{tpu_custom_call.1} parent=1 // loop_header
      %s16 = sphi 0, %s20
      %p17 = scmp.ge.s32.totalorder %s16, 4
      %s23 = sphi 0, %s35
      %s24 = sphi 0, %s31
      %s25 = sphi 0, %s23
      %s26 = sphi 0, %s24
      %s27 = sphi 0, %s25
      %s28 = sphi 0, %s26
      %s38 = sphi 0, %s40
      %s41 = sphi 0, %s38
      %s42 = sphi 0, %s41
      %s58 = sphi 0, %s42
      %s64 = sphi 0, %s66
      %s67 = sphi 0, %s64
      %s68 = sphi 0, %s67
      %s84 = sphi 0, %s68
      %s90 = sphi 0, %s92
      %s93 = sphi 0, %s90
      %s94 = sphi 0, %s93
      %s110 = sphi 0, %s94
      %s118 = sphi 0, %s120
      %s121 = sphi 0, %s118
      %s122 = sphi 0, %s121
      %s138 = sphi 0, %s122
    $region4: #{tpu_custom_call.1} parent=1 // loop_header_branch
      %19 = sbr.rel (%p17) target = $region8
    $region5: #{tpu_custom_call.1} parent=1 // loop_body
      %s21 = ssub.s32 %s16, 1
      %s22 = ssub.s32 %s16, 2
      %s29 = sadd.s32 1, %s24
      %p30 = scmp.ge.s32.totalorder %s29, 1
      %s31 = scalar_select %p30, 0, %s29
      %s32 = sadd.s32 1, %s23
      %s33 = scalar_select %p30, %s32, %s23
      %p34 = scmp.ge.s32.totalorder %s33, 2
      %s35 = scalar_select %p34, 0, %s33
      %s36 = ssub.s32 %s23, %s35
      %p37 = scmp.eq.s32.totalorder %s36, 0
      %s39 = sadd.s32 %s38, 1
      %s40 = scalar_select %p37, %s38, %s39
      %p43 = pneg %p37
      %p44 = scmp.eq.s32.totalorder %s16, 1
      %p45 = por %p43, %p44
      %p46 = scmp.ne.s32.totalorder %s38, %s41
      %p47 = scmp.eq.s32.totalorder %s16, 0
      %p48 = por %p46, %p47
      %p49 = scmp.ne.s32.totalorder %s38, %s41
      %p50 = scmp.eq.s32.totalorder %s21, 1
      %p51 = por %p49, %p50
      %p52 = scmp.ne.s32.totalorder %s41, %s42
      %p53 = scmp.eq.s32.totalorder %s21, 0
      %p54 = por %p52, %p53
      %p55 = scmp.ne.s32.totalorder %s41, %s42
      %p56 = scmp.eq.s32.totalorder %s22, 1
      %p57 = por %p55, %p56
      %p59 = scmp.ne.s32.totalorder %s42, %s58
      %p60 = scmp.eq.s32.totalorder %s22, 0
      %p61 = por %p59, %p60
      %s62 = ssub.s32 %s24, %s31
      %p63 = scmp.eq.s32.totalorder %s62, 0
      %s65 = sadd.s32 %s64, 1
      %s66 = scalar_select %p63, %s64, %s65
      %p69 = pneg %p63
      %p70 = scmp.eq.s32.totalorder %s16, 1
      %p71 = por %p69, %p70
      %p72 = scmp.ne.s32.totalorder %s64, %s67
      %p73 = scmp.eq.s32.totalorder %s16, 0
      %p74 = por %p72, %p73
      %p75 = scmp.ne.s32.totalorder %s64, %s67
      %p76 = scmp.eq.s32.totalorder %s21, 1
      %p77 = por %p75, %p76
      %p78 = scmp.ne.s32.totalorder %s67, %s68
      %p79 = scmp.eq.s32.totalorder %s21, 0
      %p80 = por %p78, %p79
      %p81 = scmp.ne.s32.totalorder %s67, %s68
      %p82 = scmp.eq.s32.totalorder %s22, 1
      %p83 = por %p81, %p82
      %p85 = scmp.ne.s32.totalorder %s68, %s84
      %p86 = scmp.eq.s32.totalorder %s22, 0
      %p87 = por %p85, %p86
      %s88 = ssub.s32 %s24, %s31
      %p89 = scmp.eq.s32.totalorder %s88, 0
      %s91 = sadd.s32 %s90, 1
      %s92 = scalar_select %p89, %s90, %s91
      %p95 = pneg %p89
      %p96 = scmp.eq.s32.totalorder %s16, 1
      %p97 = por %p95, %p96
      %p98 = scmp.ne.s32.totalorder %s90, %s93
      %p99 = scmp.eq.s32.totalorder %s16, 0
      %p100 = por %p98, %p99
      %p101 = scmp.ne.s32.totalorder %s90, %s93
      %p102 = scmp.eq.s32.totalorder %s21, 1
      %p103 = por %p101, %p102
      %p104 = scmp.ne.s32.totalorder %s93, %s94
      %p105 = scmp.eq.s32.totalorder %s21, 0
      %p106 = por %p104, %p105
      %p107 = scmp.ne.s32.totalorder %s93, %s94
      %p108 = scmp.eq.s32.totalorder %s22, 1
      %p109 = por %p107, %p108
      %p111 = scmp.ne.s32.totalorder %s94, %s110
      %p112 = scmp.eq.s32.totalorder %s22, 0
      %p113 = por %p111, %p112
      %s114 = ssub.s32 %s23, %s35
      %s115 = ssub.s32 %s24, %s31
      %s116 = sor.u32 %s114, %s115
      %p117 = scmp.eq.s32.totalorder %s116, 0
      %s119 = sadd.s32 %s118, 1
      %s120 = scalar_select %p117, %s118, %s119
      %p123 = pneg %p117
      %p124 = scmp.eq.s32.totalorder %s16, 1
      %p125 = por %p123, %p124
      %p126 = scmp.ne.s32.totalorder %s118, %s121
      %p127 = scmp.eq.s32.totalorder %s16, 0
      %p128 = por %p126, %p127
      %p129 = scmp.ne.s32.totalorder %s118, %s121
      %p130 = scmp.eq.s32.totalorder %s21, 1
      %p131 = por %p129, %p130
      %p132 = scmp.ne.s32.totalorder %s121, %s122
      %p133 = scmp.eq.s32.totalorder %s21, 0
      %p134 = por %p132, %p133
      %p135 = scmp.ne.s32.totalorder %s121, %s122
      %p136 = scmp.eq.s32.totalorder %s22, 1
      %p137 = por %p135, %p136
      %p139 = scmp.ne.s32.totalorder %s122, %s138
      %p140 = scmp.eq.s32.totalorder %s22, 0
      %p141 = por %p139, %p140
      %p142 = scmp.le.s32.totalorder 1, %s16
      %p143 = scmp.lt.s32.totalorder %s16, 3
      %p144 = pnand %p142, %p143
      %p145 = pneg %p144
      // Predicated region
      $region9: #{tpu_custom_call.1} parent=5 // pred_check
        _
      $region10: #{tpu_custom_call.1} parent=5 // pred_check_branch
        %147 = sbr.rel (%p144) target = $region12
      $region11: #{tpu_custom_call.1} parent=5 // pred_region
        %s148 = ssub.s32 %s16, 1
        // Predicated region
        $region13: #{tpu_custom_call.1} parent=11 // pred_check
          %p149 = pneg %p80
        $region14: #{tpu_custom_call.1} parent=11 // pred_check_branch
          %151 = sbr.rel (%p149) target = $region16
        $region15: #{tpu_custom_call.1} parent=11 // pred_region
          %153 = vsyncadd [#allocation6], 0
          %s154 = smul.addr %s26, 4
          %s155 = scalar_lea.hbm %s1, %s154
          %s156 = sshll.u32 %s155, 4
          %s157 = int_to_ptr.hbm [resolvable:$true] %s156
          %s158 = sshll.u32 [#allocation5], 4
          %s159 = int_to_ptr.vmem [resolvable:$true] %s158
          %164 = dma.hbm_to_vmem [thread:$0]  %s157, 256, %s159, [#allocation6], 64, 64, 4
        $region16: #{tpu_custom_call.1} parent=11 // pred_fallthru
          _
        // Predicated region
        $region17: #{tpu_custom_call.1} parent=11 // pred_check
          %p165 = pneg %p106
        $region18: #{tpu_custom_call.1} parent=11 // pred_check_branch
          %167 = sbr.rel (%p165) target = $region20
        $region19: #{tpu_custom_call.1} parent=11 // pred_region
          %p168 = scmp.lt.s32.totalorder %s26, 0
          %s169 = scalar_select %p168, %s26, 0
          %s170 = scalar_lea.vmem %s2, %s169
        $region20: #{tpu_custom_call.1} parent=11 // pred_fallthru
          _
      $region12: #{tpu_custom_call.1} parent=5 // pred_fallthru
        _
      %p171 = scmp.lt.s32.totalorder %s16, 2
      // Predicated region
      $region21: #{tpu_custom_call.1} parent=5 // pred_check
        %p172 = pneg %p171
      $region22: #{tpu_custom_call.1} parent=5 // pred_check_branch
        %174 = sbr.rel (%p172) target = $region24
      $region23: #{tpu_custom_call.1} parent=5 // pred_region
        // Predicated region
        $region25: #{tpu_custom_call.1} parent=23 // pred_check
          %p175 = pneg %p48
        $region26: #{tpu_custom_call.1} parent=23 // pred_check_branch
          %177 = sbr.rel (%p175) target = $region28
        $region27: #{tpu_custom_call.1} parent=23 // pred_region
          %s178 = sand.u32 %s38, 1
          %s179 = scalar_lea.sflag [#allocation3], %s178
          %s180 = sand.u32 %s38, 1
          %s181 = smul.addr %s180, 8
          %s182 = scalar_lea.vmem [#allocation2], %s181
          %184 = vsyncadd %s179, 0
          %s185 = smul.addr %s23, 8
          %s186 = scalar_lea.hbm %s0, %s185
          %s188 = sshll.u32 %s186, 4
          %s189 = int_to_ptr.hbm [resolvable:$true] %s188
          %s190 = sshll.u32 %s182, 4
          %s191 = int_to_ptr.vmem [resolvable:$true] %s190
          %193 = dma.hbm_to_vmem [thread:$0]  %s189, 128, %s191, %s179
        $region28: #{tpu_custom_call.1} parent=23 // pred_fallthru
          _
      $region24: #{tpu_custom_call.1} parent=5 // pred_fallthru
        _
      %p194 = scmp.le.s32.totalorder 1, %s16
      %p195 = scmp.lt.s32.totalorder %s16, 3
      %p196 = pnand %p194, %p195
      %p197 = pneg %p196
      // Predicated region
      $region29: #{tpu_custom_call.1} parent=5 // pred_check
        _
      $region30: #{tpu_custom_call.1} parent=5 // pred_check_branch
        %199 = sbr.rel (%p196) target = $region32
      $region31: #{tpu_custom_call.1} parent=5 // pred_region
        %s200 = ssub.s32 %s16, 1
        %s201 = sand.u32 %s41, 1
        %s202 = scalar_lea.sflag [#allocation3], %s201
        %s203 = sand.u32 %s41, 1
        %s204 = smul.addr %s203, 8
        %s205 = scalar_lea.vmem [#allocation2], %s204
        // Predicated region
        $region33: #{tpu_custom_call.1} parent=31 // pred_check
          %p206 = pneg %p54
        $region34: #{tpu_custom_call.1} parent=31 // pred_check_branch
          %208 = sbr.rel (%p206) target = $region36
        $region35: #{tpu_custom_call.1} parent=31 // pred_region
          %210 = dma.done %s202, 128
        $region36: #{tpu_custom_call.1} parent=31 // pred_fallthru
          _
        // Predicated region
        $region37: #{tpu_custom_call.1} parent=31 // pred_check
          %p211 = pneg %p80
        $region38: #{tpu_custom_call.1} parent=31 // pred_check_branch
          %213 = sbr.rel (%p211) target = $region40
        $region39: #{tpu_custom_call.1} parent=31 // pred_region
          %215 = dma.done [#allocation6], 256
        $region40: #{tpu_custom_call.1} parent=31 // pred_fallthru
          _
        %s216 = sand.u32 %s41, 1
        %s217 = scalar_lea.sflag [#allocation3], %s216
        %s218 = sand.u32 %s41, 1
        %s219 = smul.addr %s218, 8
        %s220 = scalar_lea.vmem [#allocation2], %s219
        %p221 = pneg %p54
        %p222 = pneg %p51
        %p223 = pneg %p80
        %p224 = pneg %p77
        %p225 = scmp.lt.s32.totalorder %s26, 0
        %s226 = scalar_select %p225, %s26, 0
        %s227 = scalar_lea.vmem %s2, %s226
        %p228 = pneg %p106
        %p229 = pneg %p103
        %p230 = pneg %p134
        %p231 = pneg %p131
        %s232 = sand.u32 %s121, 1
        %s233 = scalar_lea.sflag [#allocation4], %s232
        %s234 = sand.u32 %s121, 1
        %s235 = smul.addr %s234, 8
        %s236 = scalar_lea.vmem [#allocation7], %s235
        %p237 = scmp.lt.s32.totalorder %s26, 0
        %s238 = scalar_select %p237, %s26, 0
        %s239 = scalar_lea.vmem %s2, %s238
        %v241 = vld [vmem:[%s205] sm:$0xff]
        %v242 = vpack.c.bf16 %v241, %v241
        %v243 = vld [vmem:[#allocation5] sm:$0xf]
        %v244 = vld [vmem:[#allocation5 + $0x4] sm:$0xf]
        %v245 = vld [vmem:[#allocation5 + $0x8] sm:$0xf]
        %v246 = vld [vmem:[#allocation5 + $0xc] sm:$0xf]
        %v251 = vunpack.c.l.b16 %v243
        %v252 = vunpack.c.l.b16 %v244
        %v253 = vunpack.c.l.b16 %v245
        %v254 = vunpack.c.l.b16 %v246
        %v255 = vpack.c.b16 %v252, %v251
        %v256 = vpack.c.b16 %v254, %v253
        %vm259 = vcmask 261120
        %v261 = vsel %vm259, %v242, 0
        %263 = vmatpush.bf16.msra.mxu0 0
        %264 = vmatpush.bf16.msra.mxu0 0
        %265 = vmatpush.bf16.msra.mxu0 0
        %266 = vmatpush.bf16.msra.mxu0 0
        %267 = vmatpush.bf16.msra.mxu0 0
        %268 = vmatpush.bf16.msra.mxu0 0
        %269 = vmatpush.bf16.msra.mxu0 %v256
        %270 = vmatpush.bf16.msra.mxu0 %v255
        %271 = vmatmul.bf16.gmra.mxu0 %v261
        %v272 = vpop.f32.mrf.mxu0
        %v273 = vadd.f32 0.0, %v272
        %v274 = vpop.f32.mrf.mxu0
        %275 = vdwg.mxu0
        %v276 = vld [vmem:[%s239] sm:$0x1]
        %v278 = vperm.slane %v276, 0
        %v280 = vsub.f32 %v273, %v278
        %vm281 = vcmask 523264
        %282 = vst.msk [vmem:[%s236] sm:$0xff] %vm281, %v280
        %s283 = sand.u32 %s121, 1
        %s284 = scalar_lea.sflag [#allocation4], %s283
        %s285 = sand.u32 %s121, 1
        %s286 = smul.addr %s285, 8
        %s287 = scalar_lea.vmem [#allocation7], %s286
        // Predicated region
        $region41: #{tpu_custom_call.1} parent=31 // pred_check
          %p288 = pneg %p131
        $region42: #{tpu_custom_call.1} parent=31 // pred_check_branch
          %290 = sbr.rel (%p288) target = $region44
        $region43: #{tpu_custom_call.1} parent=31 // pred_region
          %292 = vsyncadd %s284, 0
          %s293 = sadd.s32 %s26, %s25
          %s294 = smul.addr %s293, 8
          %s295 = scalar_lea.hbm %s3, %s294
          %s297 = sshll.u32 %s287, 4
          %s298 = int_to_ptr.vmem [resolvable:$true] %s297
          %s299 = sshll.u32 %s295, 4
          %s300 = int_to_ptr.hbm [resolvable:$true] %s299
          %302 = dma.vmem_to_hbm [thread:$0]  %s298, 128, %s300, %s284
        $region44: #{tpu_custom_call.1} parent=31 // pred_fallthru
          _
      $region32: #{tpu_custom_call.1} parent=5 // pred_fallthru
        _
      %p303 = scmp.le.s32.totalorder 2, %s16
      // Predicated region
      $region45: #{tpu_custom_call.1} parent=5 // pred_check
        %p304 = pneg %p303
      $region46: #{tpu_custom_call.1} parent=5 // pred_check_branch
        %306 = sbr.rel (%p304) target = $region48
      $region47: #{tpu_custom_call.1} parent=5 // pred_region
        %s307 = ssub.s32 %s16, 2
        // Predicated region
        $region49: #{tpu_custom_call.1} parent=47 // pred_check
          %p308 = pneg %p137
        $region50: #{tpu_custom_call.1} parent=47 // pred_check_branch
          %310 = sbr.rel (%p308) target = $region52
        $region51: #{tpu_custom_call.1} parent=47 // pred_region
          %s311 = sand.u32 %s122, 1
          %s312 = scalar_lea.sflag [#allocation4], %s311
          %s313 = sand.u32 %s122, 1
          %s314 = smul.addr %s313, 8
          %s315 = scalar_lea.vmem [#allocation7], %s314
          %317 = dma.done %s312, 128
        $region52: #{tpu_custom_call.1} parent=47 // pred_fallthru
          _
      $region48: #{tpu_custom_call.1} parent=5 // pred_fallthru
        _
    $region6: #{tpu_custom_call.1} parent=1 // loop_footer
      %s20 = sadd.s32 1, %s16
    $region7: #{tpu_custom_call.1} parent=1 // loop_footer_branch
      %15 = sbr.rel target = $region3
    $region8: #{tpu_custom_call.1} parent=1 // loop_exit
      _
    %318 = vsyncpa [#allocation3], 1
    %s319 = scalar_lea.sflag [#allocation3], 1
    %320 = vsyncpa %s319, 1
    %321 = vsyncpa [#allocation6], 1
    %322 = vsyncpa [#allocation4], 1
    %s323 = scalar_lea.sflag [#allocation4], 1
    %324 = vsyncpa %s323, 1

</llo_original>
